<compile_context>
chip_gen: v7x
topology: tpu7x:2x2x1
jax: 0.10.0
libtpu: 0.0.40
codegen_flags: <defaults>
</compile_context>

<pallas_src>
import math
from functools import partial

import jax
import jax.numpy as jnp
from jax.experimental import pallas as pl
from jax.experimental.pallas import tpu as pltpu

D_IN, H1, H2, D_OUT = 784, 48, 24, 10
# lane-friendly padded sizes for the hidden layers; output padded only to 16 columns
H1_PAD, H2_PAD, OUT_W = 128, 128, 16


def _mlp_kernel(x_ref, w1_ref, b1_ref, w2_ref, b2_ref, w3_ref, b3_ref, o_ref):
    # x arrives in its HBM dtype (f32 here); cast to bf16 only for the MXU operands.
    x = x_ref[...].astype(jnp.bfloat16)                                  # (TB, 784) bf16
    h1 = jnp.dot(x, w1_ref[...], preferred_element_type=jnp.float32)    # (TB, 128) f32 acc
    h1 = jnp.maximum(h1 + b1_ref[...], 0.0)                             # bias + ReLU in f32
    h2 = jnp.dot(h1.astype(jnp.bfloat16), w2_ref[...],
                 preferred_element_type=jnp.float32)                    # (TB, 128)
    h2 = jnp.maximum(h2 + b2_ref[...], 0.0)
    h3 = jnp.dot(h2.astype(jnp.bfloat16), w3_ref[...],
                 preferred_element_type=jnp.float32)                    # (TB, 16)
    o_ref[...] = (h3 + b3_ref[...]).astype(o_ref.dtype)                 # small 16-lane store


def _pad_to(arr, shape):
    pads = [(0, t - s) for s, t in zip(arr.shape, shape)]
    return jnp.pad(arr, pads)


def _round_up(n, m):
    return ((n + m - 1) // m) * m


@partial(jax.jit, static_argnames=("tile_b",))
def linear_mlp_forward(inp, params, *, tile_b=1024):
    """inp: (B, 1, 28, 28) float32 (or bfloat16). Returns logits (B, 10) float32."""
    B = inp.shape[0]
    x = inp.reshape(B, -1)                 # flatten -> (B, 784); streamed as-is, no pad/cast
    assert x.shape[1] == D_IN
    w1, b1, w2, b2, w3, b3 = params

    # Weights/biases are tiny; pad once (fused under jit) and cast matmul operands to bf16.
    w1_p = _pad_to(w1, (D_IN, H1_PAD)).astype(jnp.bfloat16)
    w2_p = _pad_to(w2, (H1_PAD, H2_PAD)).astype(jnp.bfloat16)
    w3_p = _pad_to(w3, (H2_PAD, OUT_W)).astype(jnp.bfloat16)
    b1_p = _pad_to(b1, (1, H1_PAD)).astype(jnp.float32)
    b2_p = _pad_to(b2, (1, H2_PAD)).astype(jnp.float32)
    b3_p = _pad_to(b3, (1, OUT_W)).astype(jnp.float32)

    # Batch tiling. No batch padding: Pallas masks the ragged edge block (garbage tail rows
    # never reach valid output rows). For tiny B use a full-dim block (always legal).
    # For larger B, cap the tile so the grid has >=4 steps (keeps both v7x TensorCores busy)
    # but never above tile_b; tb is kept a multiple of 8 (sublane rule).
    if B <= 8:
        tb = B
    else:
        tb = max(8, min(tile_b, _round_up(-(-B // 4), 8)))
    grid = (pl.cdiv(B, tb),)

    def resident(shape):
        # Constant index_map -> operand is DMA'd once and stays VMEM-resident across steps.
        return pl.BlockSpec(shape, lambda i: (0, 0))

    out = pl.pallas_call(
        _mlp_kernel,
        out_shape=jax.ShapeDtypeStruct((B, OUT_W), jnp.float32),
        grid=grid,
        in_specs=[
            pl.BlockSpec((tb, D_IN), lambda i: (i, 0)),     # streamed x tiles (native dtype)
            resident((D_IN, H1_PAD)), resident((1, H1_PAD)),
            resident((H1_PAD, H2_PAD)), resident((1, H2_PAD)),
            resident((H2_PAD, OUT_W)), resident((1, OUT_W)),
        ],
        out_specs=pl.BlockSpec((tb, OUT_W), lambda i: (i, 0)),
        compiler_params=pltpu.CompilerParams(
            dimension_semantics=("parallel",),      # v7x: shard batch tiles across both TCs
            vmem_limit_bytes=48 * 1024 * 1024,      # room for tb up to ~2048 f32 rows
        ),
    )(x, w1_p, b1_p, w2_p, b2_p, w3_p, b3_p)

    return out[:, :D_OUT]


def init_params(key):
    """Deterministic init mimicking nn.Linear defaults (uniform(-1/sqrt(fan_in), 1/sqrt(fan_in))).

    Weights are stored transposed: (in_features, out_features); biases as (1, out_features)."""
    dims = [(D_IN, H1), (H1, H2), (H2, D_OUT)]
    params = []
    for (fan_in, fan_out) in dims:
        key, kw, kb = jax.random.split(key, 3)
        bound = 1.0 / math.sqrt(fan_in)
        w = jax.random.uniform(kw, (fan_in, fan_out), jnp.float32, -bound, bound)
        b = jax.random.uniform(kb, (1, fan_out), jnp.float32, -bound, bound)
        params += [w, b]
    return tuple(params)


def _reference_f32(x, params):
    w1, b1, w2, b2, w3, b3 = params
    h = jnp.maximum(x @ w1 + b1, 0.0)
    h = jnp.maximum(h @ w2 + b2, 0.0)
    return h @ w3 + b3


def _reference_bf16(x, params):
    # Mirrors the kernel's numerics: bf16 matmul inputs, f32 accumulation, f32 bias/ReLU.
    w1, b1, w2, b2, w3, b3 = params
    c = lambda a: a.astype(jnp.bfloat16)
    h = jnp.maximum(jnp.dot(c(x), c(w1), preferred_element_type=jnp.float32) + b1, 0.0)
    h = jnp.maximum(jnp.dot(c(h), c(w2), preferred_element_type=jnp.float32) + b2, 0.0)
    return jnp.dot(c(h), c(w3), preferred_element_type=jnp.float32) + b3


if __name__ == "__main__":
    key = jax.random.PRNGKey(0)
    key, kin = jax.random.split(key)
    params = init_params(key)

    # Small MNIST-like batch: (batch=2, channels=1, 28, 28) -> flattens to 784.
    inp = jax.random.normal(kin, (2, 1, 28, 28), jnp.float32)

    out = linear_mlp_forward(inp, params)
    out = jax.block_until_ready(out)
    assert out.shape == (2, 10)
    assert bool(jnp.all(jnp.isfinite(out)))

    x = inp.reshape(inp.shape[0], -1)
    ref_bf16 = _reference_bf16(x, params)   # same numerics as the kernel
    ref_f32 = _reference_f32(x, params)     # original full-f32 module semantics
    assert jnp.allclose(out, ref_bf16, atol=1e-2, rtol=1e-2)
    assert jnp.allclose(out, ref_f32, atol=1e-1, rtol=1e-1)

    print("KERNEL_OK")
</pallas_src>

<mosaic_0001>
module attributes {stable_mosaic.version = 11 : i64} {
  func.func @_mlp_kernel(%arg0: i32, %arg1: memref<2x784xf32, #tpu.memory_space<vmem>>, %arg2: memref<784x128xbf16, #tpu.memory_space<vmem>>, %arg3: memref<1x128xf32, #tpu.memory_space<vmem>>, %arg4: memref<128x128xbf16, #tpu.memory_space<vmem>>, %arg5: memref<1x128xf32, #tpu.memory_space<vmem>>, %arg6: memref<128x16xbf16, #tpu.memory_space<vmem>>, %arg7: memref<1x16xf32, #tpu.memory_space<vmem>>, %arg8: memref<2x16xf32, #tpu.memory_space<vmem>>) attributes {dimension_semantics = [#tpu.dimension_semantics<parallel>], iteration_bounds = array<i64: 1>, scalar_prefetch = 0 : i64, scratch_operands = 0 : i64, tpu.core_type = #tpu.core_type<tc>, window_params = [{transform_indices = @transform_0, window_bounds = array<i64: 2, 784>}, {pipeline_mode = #tpu.pipeline_mode<synchronous>, transform_indices = @transform_1, window_bounds = array<i64: 784, 128>}, {pipeline_mode = #tpu.pipeline_mode<synchronous>, transform_indices = @transform_2, window_bounds = array<i64: 1, 128>}, {pipeline_mode = #tpu.pipeline_mode<synchronous>, transform_indices = @transform_3, window_bounds = array<i64: 128, 128>}, {pipeline_mode = #tpu.pipeline_mode<synchronous>, transform_indices = @transform_4, window_bounds = array<i64: 1, 128>}, {pipeline_mode = #tpu.pipeline_mode<synchronous>, transform_indices = @transform_5, window_bounds = array<i64: 128, 16>}, {pipeline_mode = #tpu.pipeline_mode<synchronous>, transform_indices = @transform_6, window_bounds = array<i64: 1, 16>}, {transform_indices = @transform_7, window_bounds = array<i64: 2, 16>}]} {
    %c0 = arith.constant 0 : index
    %c0_0 = arith.constant 0 : index
    %0 = vector.load %arg1[%c0, %c0_0] : memref<2x784xf32, #tpu.memory_space<vmem>>, vector<2x784xf32>
    %1 = arith.truncf %0 : vector<2x784xf32> to vector<2x784xbf16>
    %c0_1 = arith.constant 0 : index
    %c0_2 = arith.constant 0 : index
    %2 = vector.load %arg2[%c0_1, %c0_2] : memref<784x128xbf16, #tpu.memory_space<vmem>>, vector<784x128xbf16>
    %cst = arith.constant dense<0.000000e+00> : vector<2x128xf32>
    %3 = tpu.matmul %1, %2, %cst {dimension_numbers = #tpu.dot_dimension_numbers<[1], [0], [0], [1], [0, 0, 1, 1], [], []>} : vector<2x784xbf16>, vector<784x128xbf16>, vector<2x128xf32> -> vector<2x128xf32>
    %c0_3 = arith.constant 0 : index
    %c0_4 = arith.constant 0 : index
    %4 = vector.load %arg3[%c0_3, %c0_4] : memref<1x128xf32, #tpu.memory_space<vmem>>, vector<1x128xf32>
    %5 = vector.broadcast %4 : vector<1x128xf32> to vector<2x128xf32>
    %6 = arith.addf %3, %5 : vector<2x128xf32>
    %cst_5 = arith.constant 0.000000e+00 : f32
    %7 = vector.broadcast %cst_5 : f32 to vector<2x128xf32>
    %8 = arith.maximumf %6, %7 : vector<2x128xf32>
    %9 = arith.truncf %8 : vector<2x128xf32> to vector<2x128xbf16>
    %c0_6 = arith.constant 0 : index
    %c0_7 = arith.constant 0 : index
    %10 = vector.load %arg4[%c0_6, %c0_7] : memref<128x128xbf16, #tpu.memory_space<vmem>>, vector<128x128xbf16>
    %cst_8 = arith.constant dense<0.000000e+00> : vector<2x128xf32>
    %11 = tpu.matmul %9, %10, %cst_8 {dimension_numbers = #tpu.dot_dimension_numbers<[1], [0], [0], [1], [0, 0, 1, 1], [], []>} : vector<2x128xbf16>, vector<128x128xbf16>, vector<2x128xf32> -> vector<2x128xf32>
    %c0_9 = arith.constant 0 : index
    %c0_10 = arith.constant 0 : index
    %12 = vector.load %arg5[%c0_9, %c0_10] : memref<1x128xf32, #tpu.memory_space<vmem>>, vector<1x128xf32>
    %13 = vector.broadcast %12 : vector<1x128xf32> to vector<2x128xf32>
    %14 = arith.addf %11, %13 : vector<2x128xf32>
    %cst_11 = arith.constant 0.000000e+00 : f32
    %15 = vector.broadcast %cst_11 : f32 to vector<2x128xf32>
    %16 = arith.maximumf %14, %15 : vector<2x128xf32>
    %17 = arith.truncf %16 : vector<2x128xf32> to vector<2x128xbf16>
    %c0_12 = arith.constant 0 : index
    %c0_13 = arith.constant 0 : index
    %18 = vector.load %arg6[%c0_12, %c0_13] : memref<128x16xbf16, #tpu.memory_space<vmem>>, vector<128x16xbf16>
    %cst_14 = arith.constant dense<0.000000e+00> : vector<2x16xf32>
    %19 = tpu.matmul %17, %18, %cst_14 {dimension_numbers = #tpu.dot_dimension_numbers<[1], [0], [0], [1], [0, 0, 1, 1], [], []>} : vector<2x128xbf16>, vector<128x16xbf16>, vector<2x16xf32> -> vector<2x16xf32>
    %c0_15 = arith.constant 0 : index
    %c0_16 = arith.constant 0 : index
    %20 = vector.load %arg7[%c0_15, %c0_16] : memref<1x16xf32, #tpu.memory_space<vmem>>, vector<1x16xf32>
    %21 = vector.broadcast %20 : vector<1x16xf32> to vector<2x16xf32>
    %22 = arith.addf %19, %21 : vector<2x16xf32>
    %c0_17 = arith.constant 0 : index
    %c0_18 = arith.constant 0 : index
    %23 = vector.load %arg8[%c0_17, %c0_18] : memref<2x16xf32, #tpu.memory_space<vmem>>, vector<2x16xf32>
    tpu.vector_store %arg8[%c0_17, %c0_18], %22 {strides = array<i32>} : memref<2x16xf32, #tpu.memory_space<vmem>>, vector<2x16xf32>,
    return
  }
  func.func @transform_0(%arg0: i32) -> (i32, i32) {
    %c0_i32 = arith.constant 0 : i32
    %c0_i32_0 = arith.constant 0 : i32
    return %arg0, %c0_i32 : i32, i32
  }
  func.func @transform_1(%arg0: i32) -> (i32, i32) {
    %c0_i32 = arith.constant 0 : i32
    %c0_i32_0 = arith.constant 0 : i32
    %c0_i32_1 = arith.constant 0 : i32
    return %c0_i32, %c0_i32_0 : i32, i32
  }
  func.func @transform_2(%arg0: i32) -> (i32, i32) {
    %c0_i32 = arith.constant 0 : i32
    %c0_i32_0 = arith.constant 0 : i32
    %c0_i32_1 = arith.constant 0 : i32
    return %c0_i32, %c0_i32_0 : i32, i32
  }
  func.func @transform_3(%arg0: i32) -> (i32, i32) {
    %c0_i32 = arith.constant 0 : i32
    %c0_i32_0 = arith.constant 0 : i32
    %c0_i32_1 = arith.constant 0 : i32
    return %c0_i32, %c0_i32_0 : i32, i32
  }
  func.func @transform_4(%arg0: i32) -> (i32, i32) {
    %c0_i32 = arith.constant 0 : i32
    %c0_i32_0 = arith.constant 0 : i32
    %c0_i32_1 = arith.constant 0 : i32
    return %c0_i32, %c0_i32_0 : i32, i32
  }
  func.func @transform_5(%arg0: i32) -> (i32, i32) {
    %c0_i32 = arith.constant 0 : i32
    %c0_i32_0 = arith.constant 0 : i32
    %c0_i32_1 = arith.constant 0 : i32
    return %c0_i32, %c0_i32_0 : i32, i32
  }
  func.func @transform_6(%arg0: i32) -> (i32, i32) {
    %c0_i32 = arith.constant 0 : i32
    %c0_i32_0 = arith.constant 0 : i32
    %c0_i32_1 = arith.constant 0 : i32
    return %c0_i32, %c0_i32_0 : i32, i32
  }
  func.func @transform_7(%arg0: i32) -> (i32, i32) {
    %c0_i32 = arith.constant 0 : i32
    %c0_i32_0 = arith.constant 0 : i32
    return %arg0, %c0_i32 : i32, i32
  }
}

</mosaic_0001>

<llo_original>
// kernel: linear_mlp_forward.1
$region0: #{linear_mlp_forward.1}
  #allocation0 [shape = 'u32[]', space=smem, size = 0x4, offset = 0x4, fixed_abs, tag = 'smem constant byte address 0x4 - core index']
  #allocation1 [shape = 'u32[144,128]{1,0:T(1,128)}', space=vmem, size = 0x12000, scoped, tag = 'internal scratch']
  %s0 = inlined_call_operand.vmem [shape: f32[2,784], index: 0, kind: input, shape index: {}]
  %s1 = inlined_call_operand.vmem [shape: bf16[784,128], index: 1, kind: input, shape index: {}]
  %s2 = inlined_call_operand.vmem [shape: f32[1,128], index: 2, kind: input, shape index: {}]
  %s3 = inlined_call_operand.vmem [shape: bf16[128,128], index: 3, kind: input, shape index: {}]
  %s4 = inlined_call_operand.vmem [shape: f32[1,128], index: 4, kind: input, shape index: {}]
  %s5 = inlined_call_operand.vmem [shape: bf16[128,16], index: 5, kind: input, shape index: {}]
  %s6 = inlined_call_operand.vmem [shape: f32[1,16], index: 6, kind: input, shape index: {}]
  %s7 = inlined_call_operand.hbm [shape: f32[2,16], index: 7, kind: output, shape index: {}]
  %s8 = sld [smem:[#allocation0]]
  $region38: #{linear_mlp_forward.1} parent=0
    _
  %s10 = ssub.s32 1, %s8
  %s11 = scalar_select 0, %s10, %s8
  $region1: #{linear_mlp_forward.1} parent=0
    #allocation2 [shape = 'u8[1024]{0}', space=vmem, size = 0x400, scoped, tag = 'output window, operand 0, single buffered']
    #allocation3 [shape = 's32[1]{0}', space=sflag, size = 0x4, scoped, tag = 'scoped memory for linear_mlp_forward.1']
    %12 = vsyncpa [#allocation3], 0
    // Predicated region
    $region2: #{linear_mlp_forward.1} parent=1 // pred_check
      _
    $region3: #{linear_mlp_forward.1} parent=1 // pred_check_branch
      %14 = sbr.rel (0) target = $region5
    $region4: #{linear_mlp_forward.1} parent=1 // pred_region
      _
    $region5: #{linear_mlp_forward.1} parent=1 // pred_fallthru
      _
    // Predicated region
    $region6: #{linear_mlp_forward.1} parent=1 // pred_check
      _
    $region7: #{linear_mlp_forward.1} parent=1 // pred_check_branch
      %16 = sbr.rel (0) target = $region9
    $region8: #{linear_mlp_forward.1} parent=1 // pred_region
      _
    $region9: #{linear_mlp_forward.1} parent=1 // pred_fallthru
      _
    // Predicated region
    $region10: #{linear_mlp_forward.1} parent=1 // pred_check
      _
    $region11: #{linear_mlp_forward.1} parent=1 // pred_check_branch
      %18 = sbr.rel (0) target = $region13
    $region12: #{linear_mlp_forward.1} parent=1 // pred_region
      _
    $region13: #{linear_mlp_forward.1} parent=1 // pred_fallthru
      _
    // Predicated region
    $region14: #{linear_mlp_forward.1} parent=1 // pred_check
      _
    $region15: #{linear_mlp_forward.1} parent=1 // pred_check_branch
      %20 = sbr.rel (0) target = $region17
    $region16: #{linear_mlp_forward.1} parent=1 // pred_region
      _
    $region17: #{linear_mlp_forward.1} parent=1 // pred_fallthru
      _
    // Predicated region
    $region18: #{linear_mlp_forward.1} parent=1 // pred_check
      _
    $region19: #{linear_mlp_forward.1} parent=1 // pred_check_branch
      %22 = sbr.rel (0) target = $region21
    $region20: #{linear_mlp_forward.1} parent=1 // pred_region
      _
    $region21: #{linear_mlp_forward.1} parent=1 // pred_fallthru
      _
    // Predicated region
    $region22: #{linear_mlp_forward.1} parent=1 // pred_check
      _
    $region23: #{linear_mlp_forward.1} parent=1 // pred_check_branch
      %24 = sbr.rel (0) target = $region25
    $region24: #{linear_mlp_forward.1} parent=1 // pred_region
      _
    $region25: #{linear_mlp_forward.1} parent=1 // pred_fallthru
      _
    // Predicated region
    $region26: #{linear_mlp_forward.1} parent=1 // pred_check
      _
    $region27: #{linear_mlp_forward.1} parent=1 // pred_check_branch
      %26 = sbr.rel (0) target = $region29
    $region28: #{linear_mlp_forward.1} parent=1 // pred_region
      _
    $region29: #{linear_mlp_forward.1} parent=1 // pred_fallthru
      _
    %v28 = vld [vmem:[%s0] sm:$0xff]
    %v29 = vld [vmem:[%s0 + $0x8] sm:$0x3f]
    %v32 = vcombine.high %v28, %v28
    %v34 = vunpack.c.l.s4 1983009808
    %v35 = vunpack.c.0.s8 %v34
    %v36 = vlaneseq
    %v37 = vshrl.u32 %v36, 7
    %v38 = vsub.s32 %v35, %v37
    %v39 = vrot.slane %v28, %v38
    %v41 = vunpack.c.l.s4 1983009808
    %v42 = vunpack.c.0.s8 %v41
    %v43 = vlaneseq
    %v44 = vshrl.u32 %v43, 7
    %v45 = vsub.s32 %v42, %v44
    %v46 = vrot.slane %v32, %v45
    %v47 = vcombine.high %v39, %v39
    %v48 = vcombine.high %v46, %v46
    %v49 = vcombine.high %v29, %v29
    %v51 = vunpack.c.l.s4 1983009808
    %v52 = vunpack.c.0.s8 %v51
    %v53 = vlaneseq
    %v54 = vshrl.u32 %v53, 7
    %v55 = vsub.s32 %v52, %v54
    %v56 = vrot.slane %v29, %v55
    %v58 = vunpack.c.l.s4 1983009808
    %v59 = vunpack.c.0.s8 %v58
    %v60 = vlaneseq
    %v61 = vshrl.u32 %v60, 7
    %v62 = vsub.s32 %v59, %v61
    %v63 = vrot.slane %v49, %v62
    %v64 = vcombine.high %v56, %v56
    %v72 = vpack.c.bf16 %v39, %v39
    %v73 = vpack.c.bf16 %v47, %v47
    %v74 = vpack.c.bf16 %v46, %v46
    %v75 = vpack.c.bf16 %v48, %v48
    %v76 = vpack.c.bf16 %v56, %v56
    %v77 = vpack.c.bf16 %v64, %v64
    %v78 = vpack.c.bf16 %v63, %v63
    %v79 = vld [vmem:[%s1] sm:$0xf]
    %v80 = vld [vmem:[%s1 + $0x4] sm:$0xf]
    %v81 = vld [vmem:[%s1 + $0x8] sm:$0xf]
    %v82 = vld [vmem:[%s1 + $0xc] sm:$0xf]
    %v83 = vld [vmem:[%s1 + $0x10] sm:$0xf]
    %v84 = vld [vmem:[%s1 + $0x14] sm:$0xf]
    %v85 = vld [vmem:[%s1 + $0x18] sm:$0xf]
    %v86 = vld [vmem:[%s1 + $0x1c] sm:$0xf]
    %v87 = vld [vmem:[%s1 + $0x20] sm:$0xf]
    %v88 = vld [vmem:[%s1 + $0x24] sm:$0xf]
    %v89 = vld [vmem:[%s1 + $0x28] sm:$0xf]
    %v90 = vld [vmem:[%s1 + $0x2c] sm:$0xf]
    %v91 = vld [vmem:[%s1 + $0x30] sm:$0xf]
    %v92 = vld [vmem:[%s1 + $0x34] sm:$0xf]
    %v93 = vld [vmem:[%s1 + $0x38] sm:$0xf]
    %v94 = vld [vmem:[%s1 + $0x3c] sm:$0xf]
    %v95 = vld [vmem:[%s1 + $0x40] sm:$0xf]
    %v96 = vld [vmem:[%s1 + $0x44] sm:$0xf]
    %v97 = vld [vmem:[%s1 + $0x48] sm:$0xf]
    %v98 = vld [vmem:[%s1 + $0x4c] sm:$0xf]
    %v99 = vld [vmem:[%s1 + $0x50] sm:$0xf]
    %v100 = vld [vmem:[%s1 + $0x54] sm:$0xf]
    %v101 = vld [vmem:[%s1 + $0x58] sm:$0xf]
    %v102 = vld [vmem:[%s1 + $0x5c] sm:$0xf]
    %v103 = vld [vmem:[%s1 + $0x60] sm:$0xf]
    %v104 = vld [vmem:[%s1 + $0x64] sm:$0xf]
    %v105 = vld [vmem:[%s1 + $0x68] sm:$0xf]
    %v106 = vld [vmem:[%s1 + $0x6c] sm:$0xf]
    %v107 = vld [vmem:[%s1 + $0x70] sm:$0xf]
    %v108 = vld [vmem:[%s1 + $0x74] sm:$0xf]
    %v109 = vld [vmem:[%s1 + $0x78] sm:$0xf]
    %v110 = vld [vmem:[%s1 + $0x7c] sm:$0xf]
    %v111 = vld [vmem:[%s1 + $0x80] sm:$0xf]
    %v112 = vld [vmem:[%s1 + $0x84] sm:$0xf]
    %v113 = vld [vmem:[%s1 + $0x88] sm:$0xf]
    %v114 = vld [vmem:[%s1 + $0x8c] sm:$0xf]
    %v115 = vld [vmem:[%s1 + $0x90] sm:$0xf]
    %v116 = vld [vmem:[%s1 + $0x94] sm:$0xf]
    %v117 = vld [vmem:[%s1 + $0x98] sm:$0xf]
    %v118 = vld [vmem:[%s1 + $0x9c] sm:$0xf]
    %v119 = vld [vmem:[%s1 + $0xa0] sm:$0xf]
    %v120 = vld [vmem:[%s1 + $0xa4] sm:$0xf]
    %v121 = vld [vmem:[%s1 + $0xa8] sm:$0xf]
    %v122 = vld [vmem:[%s1 + $0xac] sm:$0xf]
    %v123 = vld [vmem:[%s1 + $0xb0] sm:$0xf]
    %v124 = vld [vmem:[%s1 + $0xb4] sm:$0xf]
    %v125 = vld [vmem:[%s1 + $0xb8] sm:$0xf]
    %v126 = vld [vmem:[%s1 + $0xbc] sm:$0xf]
    %v127 = vld [vmem:[%s1 + $0xc0] sm:$0xf]
    %v128 = vld [vmem:[%s1 + $0xc4] sm:$0xf]
    %v129 = vld [vmem:[%s1 + $0xc8] sm:$0xf]
    %v130 = vld [vmem:[%s1 + $0xcc] sm:$0xf]
    %v131 = vld [vmem:[%s1 + $0xd0] sm:$0xf]
    %v132 = vld [vmem:[%s1 + $0xd4] sm:$0xf]
    %v133 = vld [vmem:[%s1 + $0xd8] sm:$0xf]
    %v134 = vld [vmem:[%s1 + $0xdc] sm:$0xf]
    %v135 = vld [vmem:[%s1 + $0xe0] sm:$0xf]
    %v136 = vld [vmem:[%s1 + $0xe4] sm:$0xf]
    %v137 = vld [vmem:[%s1 + $0xe8] sm:$0xf]
    %v138 = vld [vmem:[%s1 + $0xec] sm:$0xf]
    %v139 = vld [vmem:[%s1 + $0xf0] sm:$0xf]
    %v140 = vld [vmem:[%s1 + $0xf4] sm:$0xf]
    %v141 = vld [vmem:[%s1 + $0xf8] sm:$0xf]
    %v142 = vld [vmem:[%s1 + $0xfc] sm:$0xf]
    %v143 = vld [vmem:[%s1 + $0x100] sm:$0xf]
    %v144 = vld [vmem:[%s1 + $0x104] sm:$0xf]
    %v145 = vld [vmem:[%s1 + $0x108] sm:$0xf]
    %v146 = vld [vmem:[%s1 + $0x10c] sm:$0xf]
    %v147 = vld [vmem:[%s1 + $0x110] sm:$0xf]
    %v148 = vld [vmem:[%s1 + $0x114] sm:$0xf]
    %v149 = vld [vmem:[%s1 + $0x118] sm:$0xf]
    %v150 = vld [vmem:[%s1 + $0x11c] sm:$0xf]
    %v151 = vld [vmem:[%s1 + $0x120] sm:$0xf]
    %v152 = vld [vmem:[%s1 + $0x124] sm:$0xf]
    %v153 = vld [vmem:[%s1 + $0x128] sm:$0xf]
    %v154 = vld [vmem:[%s1 + $0x12c] sm:$0xf]
    %v155 = vld [vmem:[%s1 + $0x130] sm:$0xf]
    %v156 = vld [vmem:[%s1 + $0x134] sm:$0xf]
    %v157 = vld [vmem:[%s1 + $0x138] sm:$0xf]
    %v158 = vld [vmem:[%s1 + $0x13c] sm:$0xf]
    %v159 = vld [vmem:[%s1 + $0x140] sm:$0xf]
    %v160 = vld [vmem:[%s1 + $0x144] sm:$0xf]
    %v161 = vld [vmem:[%s1 + $0x148] sm:$0xf]
    %v162 = vld [vmem:[%s1 + $0x14c] sm:$0xf]
    %v163 = vld [vmem:[%s1 + $0x150] sm:$0xf]
    %v164 = vld [vmem:[%s1 + $0x154] sm:$0xf]
    %v165 = vld [vmem:[%s1 + $0x158] sm:$0xf]
    %v166 = vld [vmem:[%s1 + $0x15c] sm:$0xf]
    %v167 = vld [vmem:[%s1 + $0x160] sm:$0xf]
    %v168 = vld [vmem:[%s1 + $0x164] sm:$0xf]
    %v169 = vld [vmem:[%s1 + $0x168] sm:$0xf]
    %v170 = vld [vmem:[%s1 + $0x16c] sm:$0xf]
    %v171 = vld [vmem:[%s1 + $0x170] sm:$0xf]
    %v172 = vld [vmem:[%s1 + $0x174] sm:$0xf]
    %v173 = vld [vmem:[%s1 + $0x178] sm:$0xf]
    %v174 = vld [vmem:[%s1 + $0x17c] sm:$0xf]
    %v175 = vld [vmem:[%s1 + $0x180] sm:$0xf]
    %v176 = vld [vmem:[%s1 + $0x184] sm:$0xf]
    %v177 = vld [vmem:[%s2] sm:$0x1]
    %v179 = vlaneseq
    %v180 = vshrl.u32 %v179, 7
    %v181 = vsub.s32 0, %v180
    %v182 = vrot.slane %v177, %v181
    %v282 = vunpack.c.l.b16 %v79
    %v283 = vunpack.c.l.b16 %v80
    %v284 = vunpack.c.l.b16 %v81
    %v285 = vunpack.c.l.b16 %v82
    %v286 = vunpack.c.l.b16 %v83
    %v287 = vunpack.c.l.b16 %v84
    %v288 = vunpack.c.l.b16 %v85
    %v289 = vunpack.c.l.b16 %v86
    %v290 = vunpack.c.l.b16 %v87
    %v291 = vunpack.c.l.b16 %v88
    %v292 = vunpack.c.l.b16 %v89
    %v293 = vunpack.c.l.b16 %v90
    %v294 = vunpack.c.l.b16 %v91
    %v295 = vunpack.c.l.b16 %v92
    %v296 = vunpack.c.l.b16 %v93
    %v297 = vunpack.c.l.b16 %v94
    %v298 = vunpack.c.l.b16 %v95
    %v299 = vunpack.c.l.b16 %v96
    %v300 = vunpack.c.l.b16 %v97
    %v301 = vunpack.c.l.b16 %v98
    %v302 = vunpack.c.l.b16 %v99
    %v303 = vunpack.c.l.b16 %v100
    %v304 = vunpack.c.l.b16 %v101
    %v305 = vunpack.c.l.b16 %v102
    %v306 = vunpack.c.l.b16 %v103
    %v307 = vunpack.c.l.b16 %v104
    %v308 = vunpack.c.l.b16 %v105
    %v309 = vunpack.c.l.b16 %v106
    %v310 = vunpack.c.l.b16 %v107
    %v311 = vunpack.c.l.b16 %v108
    %v312 = vunpack.c.l.b16 %v109
    %v313 = vunpack.c.l.b16 %v110
    %v314 = vunpack.c.l.b16 %v111
    %v315 = vunpack.c.l.b16 %v112
    %v316 = vunpack.c.l.b16 %v113
    %v317 = vunpack.c.l.b16 %v114
    %v318 = vunpack.c.l.b16 %v115
    %v319 = vunpack.c.l.b16 %v116
    %v320 = vunpack.c.l.b16 %v117
    %v321 = vunpack.c.l.b16 %v118
    %v322 = vunpack.c.l.b16 %v119
    %v323 = vunpack.c.l.b16 %v120
    %v324 = vunpack.c.l.b16 %v121
    %v325 = vunpack.c.l.b16 %v122
    %v326 = vunpack.c.l.b16 %v123
    %v327 = vunpack.c.l.b16 %v124
    %v328 = vunpack.c.l.b16 %v125
    %v329 = vunpack.c.l.b16 %v126
    %v330 = vunpack.c.l.b16 %v127
    %v331 = vunpack.c.l.b16 %v128
    %v332 = vunpack.c.l.b16 %v129
    %v333 = vunpack.c.l.b16 %v130
    %v334 = vunpack.c.l.b16 %v131
    %v335 = vunpack.c.l.b16 %v132
    %v336 = vunpack.c.l.b16 %v133
    %v337 = vunpack.c.l.b16 %v134
    %v338 = vunpack.c.l.b16 %v135
    %v339 = vunpack.c.l.b16 %v136
    %v340 = vunpack.c.l.b16 %v137
    %v341 = vunpack.c.l.b16 %v138
    %v342 = vunpack.c.l.b16 %v139
    %v343 = vunpack.c.l.b16 %v140
    %v344 = vunpack.c.l.b16 %v141
    %v345 = vunpack.c.l.b16 %v142
    %v346 = vunpack.c.l.b16 %v143
    %v347 = vunpack.c.l.b16 %v144
    %v348 = vunpack.c.l.b16 %v145
    %v349 = vunpack.c.l.b16 %v146
    %v350 = vunpack.c.l.b16 %v147
    %v351 = vunpack.c.l.b16 %v148
    %v352 = vunpack.c.l.b16 %v149
    %v353 = vunpack.c.l.b16 %v150
    %v354 = vunpack.c.l.b16 %v151
    %v355 = vunpack.c.l.b16 %v152
    %v356 = vunpack.c.l.b16 %v153
    %v357 = vunpack.c.l.b16 %v154
    %v358 = vunpack.c.l.b16 %v155
    %v359 = vunpack.c.l.b16 %v156
    %v360 = vunpack.c.l.b16 %v157
    %v361 = vunpack.c.l.b16 %v158
    %v362 = vunpack.c.l.b16 %v159
    %v363 = vunpack.c.l.b16 %v160
    %v364 = vunpack.c.l.b16 %v161
    %v365 = vunpack.c.l.b16 %v162
    %v366 = vunpack.c.l.b16 %v163
    %v367 = vunpack.c.l.b16 %v164
    %v368 = vunpack.c.l.b16 %v165
    %v369 = vunpack.c.l.b16 %v166
    %v370 = vunpack.c.l.b16 %v167
    %v371 = vunpack.c.l.b16 %v168
    %v372 = vunpack.c.l.b16 %v169
    %v373 = vunpack.c.l.b16 %v170
    %v374 = vunpack.c.l.b16 %v171
    %v375 = vunpack.c.l.b16 %v172
    %v376 = vunpack.c.l.b16 %v173
    %v377 = vunpack.c.l.b16 %v174
    %v378 = vunpack.c.l.b16 %v175
    %v379 = vunpack.c.l.b16 %v176
    %v380 = vpack.c.b16 %v283, %v282
    %v381 = vpack.c.b16 %v285, %v284
    %v382 = vpack.c.b16 %v287, %v286
    %v383 = vpack.c.b16 %v289, %v288
    %v384 = vpack.c.b16 %v291, %v290
    %v385 = vpack.c.b16 %v293, %v292
    %v386 = vpack.c.b16 %v295, %v294
    %v387 = vpack.c.b16 %v297, %v296
    %v388 = vpack.c.b16 %v299, %v298
    %v389 = vpack.c.b16 %v301, %v300
    %v390 = vpack.c.b16 %v303, %v302
    %v391 = vpack.c.b16 %v305, %v304
    %v392 = vpack.c.b16 %v307, %v306
    %v393 = vpack.c.b16 %v309, %v308
    %v394 = vpack.c.b16 %v311, %v310
    %v395 = vpack.c.b16 %v313, %v312
    %v396 = vpack.c.b16 %v315, %v314
    %v397 = vpack.c.b16 %v317, %v316
    %v398 = vpack.c.b16 %v319, %v318
    %v399 = vpack.c.b16 %v321, %v320
    %v400 = vpack.c.b16 %v323, %v322
    %v401 = vpack.c.b16 %v325, %v324
    %v402 = vpack.c.b16 %v327, %v326
    %v403 = vpack.c.b16 %v329, %v328
    %v404 = vpack.c.b16 %v331, %v330
    %v405 = vpack.c.b16 %v333, %v332
    %v406 = vpack.c.b16 %v335, %v334
    %v407 = vpack.c.b16 %v337, %v336
    %v408 = vpack.c.b16 %v339, %v338
    %v409 = vpack.c.b16 %v341, %v340
    %v410 = vpack.c.b16 %v343, %v342
    %v411 = vpack.c.b16 %v345, %v344
    %v412 = vpack.c.b16 %v347, %v346
    %v413 = vpack.c.b16 %v349, %v348
    %v414 = vpack.c.b16 %v351, %v350
    %v415 = vpack.c.b16 %v353, %v352
    %v416 = vpack.c.b16 %v355, %v354
    %v417 = vpack.c.b16 %v357, %v356
    %v418 = vpack.c.b16 %v359, %v358
    %v419 = vpack.c.b16 %v361, %v360
    %v420 = vpack.c.b16 %v363, %v362
    %v421 = vpack.c.b16 %v365, %v364
    %v422 = vpack.c.b16 %v367, %v366
    %v423 = vpack.c.b16 %v369, %v368
    %v424 = vpack.c.b16 %v371, %v370
    %v425 = vpack.c.b16 %v373, %v372
    %v426 = vpack.c.b16 %v375, %v374
    %v427 = vpack.c.b16 %v377, %v376
    %v428 = vpack.c.b16 %v379, %v378
    %vm478 = vcmask 130048
    %v480 = vsel %vm478, %v78, 0
    %482 = vmatprep.subr.bf16.mxu0 0
    %483 = vmatpush1.bf16.msra.mxu0 %v380
    %484 = vmatprep.subr.bf16.mxu0 0
    %485 = vmatpush1.bf16.msra.mxu0 %v381
    %486 = vmatprep.subr.bf16.mxu0 0
    %487 = vmatpush1.bf16.msra.mxu0 %v382
    %488 = vmatprep.subr.bf16.mxu0 0
    %489 = vmatpush1.bf16.msra.mxu0 %v383
    %490 = vmatprep.subr.bf16.mxu0 0
    %491 = vmatpush1.bf16.msra.mxu0 %v384
    %492 = vmatprep.subr.bf16.mxu0 0
    %493 = vmatpush1.bf16.msra.mxu0 %v385
    %494 = vmatprep.subr.bf16.mxu0 0
    %495 = vmatpush1.bf16.msra.mxu0 %v386
    %496 = vmatprep.subr.bf16.mxu0 0
    %497 = vmatpush1.bf16.msra.mxu0 %v387
    %498 = vmatprep.subr.bf16.mxu0 0
    %499 = vmatpush1.bf16.msra.mxu0 %v388
    %500 = vmatprep.subr.bf16.mxu0 0
    %501 = vmatpush1.bf16.msra.mxu0 %v389
    %502 = vmatprep.subr.bf16.mxu0 0
    %503 = vmatpush1.bf16.msra.mxu0 %v390
    %504 = vmatprep.subr.bf16.mxu0 0
    %505 = vmatpush1.bf16.msra.mxu0 %v391
    %506 = vmatprep.subr.bf16.mxu0 0
    %507 = vmatpush1.bf16.msra.mxu0 %v392
    %508 = vmatprep.subr.bf16.mxu0 0
    %509 = vmatpush1.bf16.msra.mxu0 %v393
    %510 = vmatprep.subr.bf16.mxu0 0
    %511 = vmatpush1.bf16.msra.mxu0 %v394
    %512 = vmatprep.subr.bf16.mxu0 0
    %513 = vmatpush1.bf16.msra.mxu0 %v395
    %514 = vmatprep.mubr.bf16.mxu0 %v73
    %515 = vmatmul.mubr.bf16.gmra.mrb[0].mxu0 %v72
    %v516 = vpop.f32.mrb[0].mxu0
    %v517 = vadd.f32 %v182, %v516
    %v518 = vpop.f32.mrb[0].mxu0
    %v519 = vpop.f32.mrb[0].mxu0
    %v520 = vpop.f32.mrb[0].mxu0
    %521 = vdwg.mxu0
    %522 = vmatprep.subr.bf16.mxu0 0
    %523 = vmatpush1.bf16.msra.mxu0 %v396
    %524 = vmatprep.subr.bf16.mxu0 0
    %525 = vmatpush1.bf16.msra.mxu0 %v397
    %526 = vmatprep.subr.bf16.mxu0 0
    %527 = vmatpush1.bf16.msra.mxu0 %v398
    %528 = vmatprep.subr.bf16.mxu0 0
    %529 = vmatpush1.bf16.msra.mxu0 %v399
    %530 = vmatprep.subr.bf16.mxu0 0
    %531 = vmatpush1.bf16.msra.mxu0 %v400
    %532 = vmatprep.subr.bf16.mxu0 0
    %533 = vmatpush1.bf16.msra.mxu0 %v401
    %534 = vmatprep.subr.bf16.mxu0 0
    %535 = vmatpush1.bf16.msra.mxu0 %v402
    %536 = vmatprep.subr.bf16.mxu0 0
    %537 = vmatpush1.bf16.msra.mxu0 %v403
    %538 = vmatprep.subr.bf16.mxu0 0
    %539 = vmatpush1.bf16.msra.mxu0 %v404
    %540 = vmatprep.subr.bf16.mxu0 0
    %541 = vmatpush1.bf16.msra.mxu0 %v405
    %542 = vmatprep.subr.bf16.mxu0 0
    %543 = vmatpush1.bf16.msra.mxu0 %v406
    %544 = vmatprep.subr.bf16.mxu0 0
    %545 = vmatpush1.bf16.msra.mxu0 %v407
    %546 = vmatprep.subr.bf16.mxu0 0
    %547 = vmatpush1.bf16.msra.mxu0 %v408
    %548 = vmatprep.subr.bf16.mxu0 0
    %549 = vmatpush1.bf16.msra.mxu0 %v409
    %550 = vmatprep.subr.bf16.mxu0 0
    %551 = vmatpush1.bf16.msra.mxu0 %v410
    %552 = vmatprep.subr.bf16.mxu0 0
    %553 = vmatpush1.bf16.msra.mxu0 %v411
    %554 = vmatprep.mubr.bf16.mxu0 %v75
    %555 = vmatmul.mubr.bf16.gmra.mrb[0].mxu0 %v74
    %v556 = vpop.f32.mrb[0].mxu0
    %v557 = vadd.f32 %v517, %v556
    %v558 = vpop.f32.mrb[0].mxu0
    %v559 = vpop.f32.mrb[0].mxu0
    %v560 = vpop.f32.mrb[0].mxu0
    %561 = vdwg.mxu0
    %562 = vmatprep.subr.bf16.mxu0 0
    %563 = vmatpush1.bf16.msra.mxu0 %v412
    %564 = vmatprep.subr.bf16.mxu0 0
    %565 = vmatpush1.bf16.msra.mxu0 %v413
    %566 = vmatprep.subr.bf16.mxu0 0
    %567 = vmatpush1.bf16.msra.mxu0 %v414
    %568 = vmatprep.subr.bf16.mxu0 0
    %569 = vmatpush1.bf16.msra.mxu0 %v415
    %570 = vmatprep.subr.bf16.mxu0 0
    %571 = vmatpush1.bf16.msra.mxu0 %v416
    %572 = vmatprep.subr.bf16.mxu0 0
    %573 = vmatpush1.bf16.msra.mxu0 %v417
    %574 = vmatprep.subr.bf16.mxu0 0
    %575 = vmatpush1.bf16.msra.mxu0 %v418
    %576 = vmatprep.subr.bf16.mxu0 0
    %577 = vmatpush1.bf16.msra.mxu0 %v419
    %578 = vmatprep.subr.bf16.mxu0 0
    %579 = vmatpush1.bf16.msra.mxu0 %v420
    %580 = vmatprep.subr.bf16.mxu0 0
    %581 = vmatpush1.bf16.msra.mxu0 %v421
    %582 = vmatprep.subr.bf16.mxu0 0
    %583 = vmatpush1.bf16.msra.mxu0 %v422
    %584 = vmatprep.subr.bf16.mxu0 0
    %585 = vmatpush1.bf16.msra.mxu0 %v423
    %586 = vmatprep.subr.bf16.mxu0 0
    %587 = vmatpush1.bf16.msra.mxu0 %v424
    %588 = vmatprep.subr.bf16.mxu0 0
    %589 = vmatpush1.bf16.msra.mxu0 %v425
    %590 = vmatprep.subr.bf16.mxu0 0
    %591 = vmatpush1.bf16.msra.mxu0 %v426
    %592 = vmatprep.subr.bf16.mxu0 0
    %593 = vmatpush1.bf16.msra.mxu0 %v427
    %594 = vmatprep.mubr.bf16.mxu0 %v77
    %595 = vmatmul.mubr.bf16.gmra.mrb[0].mxu0 %v76
    %v596 = vpop.f32.mrb[0].mxu0
    %v597 = vadd.f32 %v557, %v596
    %v598 = vpop.f32.mrb[0].mxu0
    %v599 = vpop.f32.mrb[0].mxu0
    %v600 = vpop.f32.mrb[0].mxu0
    %601 = vdwg.mxu0
    %602 = vmatprep.subr.bf16.mxu0 0
    %603 = vmatpush1.bf16.msra.mxu0 %v428
    %604 = vmatprep.subr.bf16.mxu0 0
    %605 = vmatpush1.bf16.msra.mxu0 0
    %606 = vmatprep.subr.bf16.mxu0 0
    %607 = vmatpush1.bf16.msra.mxu0 0
    %608 = vmatprep.subr.bf16.mxu0 0
    %609 = vmatpush1.bf16.msra.mxu0 0
    %610 = vmatprep.subr.bf16.mxu0 0
    %611 = vmatpush1.bf16.msra.mxu0 0
    %612 = vmatprep.subr.bf16.mxu0 0
    %613 = vmatpush1.bf16.msra.mxu0 0
    %614 = vmatprep.subr.bf16.mxu0 0
    %615 = vmatpush1.bf16.msra.mxu0 0
    %616 = vmatprep.subr.bf16.mxu0 0
    %617 = vmatpush1.bf16.msra.mxu0 0
    %618 = vmatprep.subr.bf16.mxu0 0
    %619 = vmatpush1.bf16.msra.mxu0 0
    %620 = vmatprep.subr.bf16.mxu0 0
    %621 = vmatpush1.bf16.msra.mxu0 0
    %622 = vmatprep.subr.bf16.mxu0 0
    %623 = vmatpush1.bf16.msra.mxu0 0
    %624 = vmatprep.subr.bf16.mxu0 0
    %625 = vmatpush1.bf16.msra.mxu0 0
    %626 = vmatprep.subr.bf16.mxu0 0
    %627 = vmatpush1.bf16.msra.mxu0 0
    %628 = vmatprep.subr.bf16.mxu0 0
    %629 = vmatpush1.bf16.msra.mxu0 0
    %630 = vmatprep.subr.bf16.mxu0 0
    %631 = vmatpush1.bf16.msra.mxu0 0
    %632 = vmatprep.subr.bf16.mxu0 0
    %633 = vmatpush1.bf16.msra.mxu0 0
    %634 = vmatprep.mubr.bf16.mxu0 0
    %635 = vmatmul.mubr.bf16.gmra.mrb[0].mxu0 %v480
    %v636 = vpop.f32.mrb[0].mxu0
    %v637 = vadd.f32 %v597, %v636
    %v638 = vpop.f32.mrb[0].mxu0
    %v639 = vpop.f32.mrb[0].mxu0
    %v640 = vpop.f32.mrb[0].mxu0
    %641 = vdwg.mxu0
    %v642 = vmax.f32 %v637, 0.0
    %v643 = vpack.c.bf16 %v642, %v642
    %v644 = vld [vmem:[%s3] sm:$0xf]
    %v645 = vld [vmem:[%s3 + $0x4] sm:$0xf]
    %v646 = vld [vmem:[%s3 + $0x8] sm:$0xf]
    %v647 = vld [vmem:[%s3 + $0xc] sm:$0xf]
    %v648 = vld [vmem:[%s3 + $0x10] sm:$0xf]
    %v649 = vld [vmem:[%s3 + $0x14] sm:$0xf]
    %v650 = vld [vmem:[%s3 + $0x18] sm:$0xf]
    %v651 = vld [vmem:[%s3 + $0x1c] sm:$0xf]
    %v652 = vld [vmem:[%s3 + $0x20] sm:$0xf]
    %v653 = vld [vmem:[%s3 + $0x24] sm:$0xf]
    %v654 = vld [vmem:[%s3 + $0x28] sm:$0xf]
    %v655 = vld [vmem:[%s3 + $0x2c] sm:$0xf]
    %v656 = vld [vmem:[%s3 + $0x30] sm:$0xf]
    %v657 = vld [vmem:[%s3 + $0x34] sm:$0xf]
    %v658 = vld [vmem:[%s3 + $0x38] sm:$0xf]
    %v659 = vld [vmem:[%s3 + $0x3c] sm:$0xf]
    %v660 = vld [vmem:[%s4] sm:$0x1]
    %v662 = vlaneseq
    %v663 = vshrl.u32 %v662, 7
    %v664 = vsub.s32 0, %v663
    %v665 = vrot.slane %v660, %v664
    %v683 = vunpack.c.l.b16 %v644
    %v684 = vunpack.c.l.b16 %v645
    %v685 = vunpack.c.l.b16 %v646
    %v686 = vunpack.c.l.b16 %v647
    %v687 = vunpack.c.l.b16 %v648
    %v688 = vunpack.c.l.b16 %v649
    %v689 = vunpack.c.l.b16 %v650
    %v690 = vunpack.c.l.b16 %v651
    %v691 = vunpack.c.l.b16 %v652
    %v692 = vunpack.c.l.b16 %v653
    %v693 = vunpack.c.l.b16 %v654
    %v694 = vunpack.c.l.b16 %v655
    %v695 = vunpack.c.l.b16 %v656
    %v696 = vunpack.c.l.b16 %v657
    %v697 = vunpack.c.l.b16 %v658
    %v698 = vunpack.c.l.b16 %v659
    %v699 = vpack.c.b16 %v684, %v683
    %v700 = vpack.c.b16 %v686, %v685
    %v701 = vpack.c.b16 %v688, %v687
    %v702 = vpack.c.b16 %v690, %v689
    %v703 = vpack.c.b16 %v692, %v691
    %v704 = vpack.c.b16 %v694, %v693
    %v705 = vpack.c.b16 %v696, %v695
    %v706 = vpack.c.b16 %v698, %v697
    %715 = vmatprep.subr.bf16.mxu0 0
    %716 = vmatpush1.bf16.msra.mxu0 %v699
    %717 = vmatprep.subr.bf16.mxu0 0
    %718 = vmatpush1.bf16.msra.mxu0 %v700
    %719 = vmatprep.subr.bf16.mxu0 0
    %720 = vmatpush1.bf16.msra.mxu0 %v701
    %721 = vmatprep.subr.bf16.mxu0 0
    %722 = vmatpush1.bf16.msra.mxu0 %v702
    %723 = vmatprep.subr.bf16.mxu0 0
    %724 = vmatpush1.bf16.msra.mxu0 %v703
    %725 = vmatprep.subr.bf16.mxu0 0
    %726 = vmatpush1.bf16.msra.mxu0 %v704
    %727 = vmatprep.subr.bf16.mxu0 0
    %728 = vmatpush1.bf16.msra.mxu0 %v705
    %729 = vmatprep.subr.bf16.mxu0 0
    %730 = vmatpush1.bf16.msra.mxu0 %v706
    %731 = vmatprep.subr.bf16.mxu0 0
    %732 = vmatpush1.bf16.msra.mxu0 0
    %733 = vmatprep.subr.bf16.mxu0 0
    %734 = vmatpush1.bf16.msra.mxu0 0
    %735 = vmatprep.subr.bf16.mxu0 0
    %736 = vmatpush1.bf16.msra.mxu0 0
    %737 = vmatprep.subr.bf16.mxu0 0
    %738 = vmatpush1.bf16.msra.mxu0 0
    %739 = vmatprep.subr.bf16.mxu0 0
    %740 = vmatpush1.bf16.msra.mxu0 0
    %741 = vmatprep.subr.bf16.mxu0 0
    %742 = vmatpush1.bf16.msra.mxu0 0
    %743 = vmatprep.subr.bf16.mxu0 0
    %744 = vmatpush1.bf16.msra.mxu0 0
    %745 = vmatprep.subr.bf16.mxu0 0
    %746 = vmatpush1.bf16.msra.mxu0 0
    %747 = vmatprep.mubr.bf16.mxu0 0
    %748 = vmatmul.mubr.bf16.gmra.mrb[0].mxu0 %v643
    %v749 = vpop.f32.mrb[0].mxu0
    %v750 = vadd.f32 %v665, %v749
    %v751 = vpop.f32.mrb[0].mxu0
    %v752 = vpop.f32.mrb[0].mxu0
    %v753 = vpop.f32.mrb[0].mxu0
    %754 = vdwg.mxu0
    %v755 = vmax.f32 %v750, 0.0
    %v756 = vpack.c.bf16 %v755, %v755
    %v757 = vld [vmem:[%s5] sm:$0xf]
    %v758 = vld [vmem:[%s5 + $0x4] sm:$0xf]
    %v759 = vld [vmem:[%s5 + $0x8] sm:$0xf]
    %v760 = vld [vmem:[%s5 + $0xc] sm:$0xf]
    %v761 = vld [vmem:[%s5 + $0x10] sm:$0xf]
    %v762 = vld [vmem:[%s5 + $0x14] sm:$0xf]
    %v763 = vld [vmem:[%s5 + $0x18] sm:$0xf]
    %v764 = vld [vmem:[%s5 + $0x1c] sm:$0xf]
    %v765 = vld [vmem:[%s5 + $0x20] sm:$0xf]
    %v766 = vld [vmem:[%s5 + $0x24] sm:$0xf]
    %v767 = vld [vmem:[%s5 + $0x28] sm:$0xf]
    %v768 = vld [vmem:[%s5 + $0x2c] sm:$0xf]
    %v769 = vld [vmem:[%s5 + $0x30] sm:$0xf]
    %v770 = vld [vmem:[%s5 + $0x34] sm:$0xf]
    %v771 = vld [vmem:[%s5 + $0x38] sm:$0xf]
    %v772 = vld [vmem:[%s5 + $0x3c] sm:$0xf]
    %v773 = vld [vmem:[%s6] sm:$0x1]
    %v775 = vlaneseq
    %v776 = vshrl.u32 %v775, 7
    %v777 = vsub.s32 0, %v776
    %v778 = vrot.slane %v773, %v777
    %v796 = vunpack.c.l.b16 %v757
    %v797 = vunpack.c.l.b16 %v758
    %v798 = vunpack.c.l.b16 %v759
    %v799 = vunpack.c.l.b16 %v760
    %v800 = vunpack.c.l.b16 %v761
    %v801 = vunpack.c.l.b16 %v762
    %v802 = vunpack.c.l.b16 %v763
    %v803 = vunpack.c.l.b16 %v764
    %v804 = vunpack.c.l.b16 %v765
    %v805 = vunpack.c.l.b16 %v766
    %v806 = vunpack.c.l.b16 %v767
    %v807 = vunpack.c.l.b16 %v768
    %v808 = vunpack.c.l.b16 %v769
    %v809 = vunpack.c.l.b16 %v770
    %v810 = vunpack.c.l.b16 %v771
    %v811 = vunpack.c.l.b16 %v772
    %v812 = vpack.c.b16 %v797, %v796
    %v813 = vpack.c.b16 %v799, %v798
    %v814 = vpack.c.b16 %v801, %v800
    %v815 = vpack.c.b16 %v803, %v802
    %v816 = vpack.c.b16 %v805, %v804
    %v817 = vpack.c.b16 %v807, %v806
    %v818 = vpack.c.b16 %v809, %v808
    %v819 = vpack.c.b16 %v811, %v810
    %828 = vmatprep.subr.bf16.mxu0 0
    %829 = vmatpush1.bf16.msra.mxu0 %v812
    %830 = vmatprep.subr.bf16.mxu0 0
    %831 = vmatpush1.bf16.msra.mxu0 %v813
    %832 = vmatprep.subr.bf16.mxu0 0
    %833 = vmatpush1.bf16.msra.mxu0 %v814
    %834 = vmatprep.subr.bf16.mxu0 0
    %835 = vmatpush1.bf16.msra.mxu0 %v815
    %836 = vmatprep.subr.bf16.mxu0 0
    %837 = vmatpush1.bf16.msra.mxu0 %v816
    %838 = vmatprep.subr.bf16.mxu0 0
    %839 = vmatpush1.bf16.msra.mxu0 %v817
    %840 = vmatprep.subr.bf16.mxu0 0
    %841 = vmatpush1.bf16.msra.mxu0 %v818
    %842 = vmatprep.subr.bf16.mxu0 0
    %843 = vmatpush1.bf16.msra.mxu0 %v819
    %844 = vmatprep.subr.bf16.mxu0 0
    %845 = vmatpush1.bf16.msra.mxu0 0
    %846 = vmatprep.subr.bf16.mxu0 0
    %847 = vmatpush1.bf16.msra.mxu0 0
    %848 = vmatprep.subr.bf16.mxu0 0
    %849 = vmatpush1.bf16.msra.mxu0 0
    %850 = vmatprep.subr.bf16.mxu0 0
    %851 = vmatpush1.bf16.msra.mxu0 0
    %852 = vmatprep.subr.bf16.mxu0 0
    %853 = vmatpush1.bf16.msra.mxu0 0
    %854 = vmatprep.subr.bf16.mxu0 0
    %855 = vmatpush1.bf16.msra.mxu0 0
    %856 = vmatprep.subr.bf16.mxu0 0
    %857 = vmatpush1.bf16.msra.mxu0 0
    %858 = vmatprep.subr.bf16.mxu0 0
    %859 = vmatpush1.bf16.msra.mxu0 0
    %860 = vmatprep.mubr.bf16.mxu0 0
    %861 = vmatmul.mubr.bf16.gmra.mrb[0].mxu0 %v756
    %v862 = vpop.f32.mrb[0].mxu0
    %v863 = vadd.f32 %v778, %v862
    %v864 = vpop.f32.mrb[0].mxu0
    %v865 = vpop.f32.mrb[0].mxu0
    %v866 = vpop.f32.mrb[0].mxu0
    %867 = vdwg.mxu0
    %vm868 = vcmask 123904
    %869 = vst.msk [vmem:[#allocation2] sm:$0x3] %vm868, %v863
    // Predicated region
    $region30: #{linear_mlp_forward.1} parent=1 // pred_check
      _
    $region31: #{linear_mlp_forward.1} parent=1 // pred_check_branch
      %871 = sbr.rel (0) target = $region33
    $region32: #{linear_mlp_forward.1} parent=1 // pred_region
      %s873 = ssub.s32 32, 32
      %874 = vsyncadd [#allocation3], %s873
      %s876 = sshll.u32 [#allocation2], 4
      %s877 = int_to_ptr.vmem [resolvable:$true] %s876
      %879 = dma.vmem_to_hbm [thread:$0]  %s877, 32, %s7, [#allocation3]
    $region33: #{linear_mlp_forward.1} parent=1 // pred_fallthru
      _
    // Predicated region
    $region34: #{linear_mlp_forward.1} parent=1 // pred_check
      _
    $region35: #{linear_mlp_forward.1} parent=1 // pred_check_branch
      %881 = sbr.rel (0) target = $region37
    $region36: #{linear_mlp_forward.1} parent=1 // pred_region
      %882 = dma.done [#allocation3], 32
    $region37: #{linear_mlp_forward.1} parent=1 // pred_fallthru
      _
    %883 = vsyncpa [#allocation3], 1

</llo_original>
